<compile_context>
chip_gen: v5e
topology: v5e:2x2
jax: 0.10.0
libtpu: 0.0.40
codegen_flags: <defaults>
</compile_context>

<pallas_src>
import jax
import jax.numpy as jnp
from jax.experimental import pallas as pl
from jax.experimental.pallas import tpu as pltpu


def _choose_tiles(N, hw, C, itemsize, target_bytes=4 << 20):
    """Pick (batch tile TN, spatial tile T_HW) for ~4 MiB input blocks."""
    per_image = max(hw * C * itemsize, 1)  # one full-HW image slab in bytes
    if N <= 8:
        tn = N  # block equals full batch dim -> allowed & sublane-dense enough
    else:
        # multiple of 8 rows, a few MiB per block, and >=2 parallel grid steps
        tn = max(8, (min(target_bytes // per_image, N // 2) // 8) * 8)
    # Tile HW only when a TN-batch of full-HW slabs would blow the VMEM budget.
    if tn * per_image > 2 * target_bytes:
        t_hw = min(hw, max(8, (target_bytes // (tn * C * itemsize)) // 8 * 8))
    else:
        t_hw = hw
    return tn, t_hw


def _make_kernel(hw, t_hw):
    needs_mask = (hw % t_hw) != 0
    inv_hw = 1.0 / float(hw)

    def kernel(x_ref, max_ref, avg_ref, max_acc, sum_acc):
        # x_ref: (TN, T_HW, C) block; reduction over axis 1 (sublane axis).
        k = pl.program_id(1)

        @pl.when(k == 0)
        def _():
            max_acc[...] = jnp.full_like(max_acc, -jnp.inf)
            sum_acc[...] = jnp.zeros_like(sum_acc)

        x = x_ref[...]  # native dtype, no whole-block upcast
        if needs_mask:
            # Mask rows of the (padded) last HW tile so they don't pollute
            # the max (-inf fill) or the sum (0 fill).
            row = jax.lax.broadcasted_iota(jnp.int32, x.shape, 1)
            valid = (k * t_hw + row) < hw
            x_max = jnp.where(valid, x, jnp.array(-jnp.inf, x.dtype))
            x_sum = jnp.where(valid, x, jnp.array(0, x.dtype))
        else:
            x_max = x
            x_sum = x

        max_acc[...] = jnp.maximum(max_acc[...], jnp.max(x_max, axis=1))
        sum_acc[...] = sum_acc[...] + jnp.sum(x_sum, axis=1, dtype=jnp.float32)

        @pl.when(k == pl.num_programs(1) - 1)
        def _():
            max_ref[...] = max_acc[...].astype(max_ref.dtype)
            avg_ref[...] = (sum_acc[...] * inv_hw).astype(avg_ref.dtype)

    return kernel


def adaptive_concat_pool2d(x):
    """x: (N, C, H, W) -> (N, 2C, 1, 1) = cat([max_pool(1,1), avg_pool(1,1)], dim=1)."""
    N, C, H, W = x.shape
    hw = H * W

    # (N, HW, C): reduction over sublanes, C on the lane axis (lane-dense output).
    x_nhwc = jnp.transpose(x, (0, 2, 3, 1)).reshape(N, hw, C)

    itemsize = jnp.dtype(x.dtype).itemsize
    tn, t_hw = _choose_tiles(N, hw, C, itemsize)
    grid = (pl.cdiv(N, tn), pl.cdiv(hw, t_hw))

    mx, av = pl.pallas_call(
        _make_kernel(hw, t_hw),
        out_shape=(jax.ShapeDtypeStruct((N, C), x.dtype),
                   jax.ShapeDtypeStruct((N, C), x.dtype)),
        grid_spec=pltpu.PrefetchScalarGridSpec(
            num_scalar_prefetch=0,
            grid=grid,
            in_specs=[pl.BlockSpec((tn, t_hw, C), lambda i, k: (i, k, 0))],
            out_specs=[pl.BlockSpec((tn, C), lambda i, k: (i, 0)),
                       pl.BlockSpec((tn, C), lambda i, k: (i, 0))],
            scratch_shapes=[pltpu.VMEM((tn, C), x.dtype),      # running max (native dtype)
                            pltpu.VMEM((tn, C), jnp.float32)],  # running sum (f32)
        ),
        compiler_params=pltpu.CompilerParams(
            dimension_semantics=("parallel", "arbitrary"),
            vmem_limit_bytes=48 * 1024 * 1024,
        ),
    )(x_nhwc)

    out = jnp.concatenate([mx, av], axis=1)  # max first, then avg (torch.cat order)
    return out.reshape(N, 2 * C, 1, 1)


def _reference(x):
    ref_max = jnp.max(x, axis=(2, 3), keepdims=True)
    ref_avg = jnp.mean(x, axis=(2, 3), keepdims=True)
    return jnp.concatenate([ref_max, ref_avg], axis=1)


if __name__ == "__main__":
    key = jax.random.PRNGKey(0)

    # Main test (matches the module's expected small shape).
    N, C, H, W = 2, 4, 16, 16
    x = jax.random.normal(key, (N, C, H, W), dtype=jnp.float32)
    y = adaptive_concat_pool2d(x)
    jax.block_until_ready(y)
    ref = _reference(x)
    assert y.shape == (N, 2 * C, 1, 1), y.shape
    assert jnp.allclose(y, ref, atol=1e-5, rtol=1e-5), "mismatch vs reference (main)"

    # Extra odd-shaped check (non-power-of-two dims, full-dim blocks).
    key2 = jax.random.PRNGKey(1)
    x2 = jax.random.normal(key2, (3, 5, 3, 7), dtype=jnp.float32)
    y2 = adaptive_concat_pool2d(x2)
    jax.block_until_ready(y2)
    ref2 = _reference(x2)
    assert y2.shape == (3, 10, 1, 1), y2.shape
    assert jnp.allclose(y2, ref2, atol=1e-5, rtol=1e-5), "mismatch vs reference (odd)"

    print("KERNEL_OK")
</pallas_src>

<mosaic_0001>
module attributes {stable_mosaic.version = 11 : i64} {
  func.func @kernel(%arg0: i32, %arg1: i32, %arg2: memref<2x256x4xf32, #tpu.memory_space<vmem>>, %arg3: memref<2x4xf32, #tpu.memory_space<vmem>>, %arg4: memref<2x4xf32, #tpu.memory_space<vmem>>, %arg5: memref<2x4xf32, #tpu.memory_space<vmem>>, %arg6: memref<2x4xf32, #tpu.memory_space<vmem>>) attributes {dimension_semantics = [#tpu.dimension_semantics<parallel>, #tpu.dimension_semantics<arbitrary>], iteration_bounds = array<i64: 1, 1>, scalar_prefetch = 0 : i64, scratch_operands = 2 : i64, tpu.core_type = #tpu.core_type<tc>, window_params = [{transform_indices = @transform_0, window_bounds = array<i64: 2, 256, 4>}, {transform_indices = @transform_1, window_bounds = array<i64: 2, 4>}, {transform_indices = @transform_2, window_bounds = array<i64: 2, 4>}]} {
    %c0_i32 = arith.constant 0 : i32
    %0 = arith.cmpi eq, %arg1, %c0_i32 : i32
    %1 = arith.extui %0 : i1 to i32
    %c0_i32_0 = arith.constant 0 : i32
    %2 = arith.cmpi ne, %1, %c0_i32_0 : i32
    scf.if %2 {
      %cst_14 = arith.constant 0xFF800000 : f32
      %15 = vector.broadcast %cst_14 : f32 to vector<2x4xf32>
      %c0_15 = arith.constant 0 : index
      %c0_16 = arith.constant 0 : index
      %16 = vector.load %arg5[%c0_15, %c0_16] : memref<2x4xf32, #tpu.memory_space<vmem>>, vector<2x4xf32>
      tpu.vector_store %arg5[%c0_15, %c0_16], %15 {strides = array<i32>} : memref<2x4xf32, #tpu.memory_space<vmem>>, vector<2x4xf32>,
      %cst_17 = arith.constant 0.000000e+00 : f32
      %17 = vector.broadcast %cst_17 : f32 to vector<2x4xf32>
      %c0_18 = arith.constant 0 : index
      %c0_19 = arith.constant 0 : index
      %18 = vector.load %arg6[%c0_18, %c0_19] : memref<2x4xf32, #tpu.memory_space<vmem>>, vector<2x4xf32>
      tpu.vector_store %arg6[%c0_18, %c0_19], %17 {strides = array<i32>} : memref<2x4xf32, #tpu.memory_space<vmem>>, vector<2x4xf32>,
    } else {
    }
    %c0 = arith.constant 0 : index
    %c0_1 = arith.constant 0 : index
    %c0_2 = arith.constant 0 : index
    %3 = vector.load %arg2[%c0, %c0_1, %c0_2] : memref<2x256x4xf32, #tpu.memory_space<vmem>>, vector<2x256x4xf32>
    %c0_3 = arith.constant 0 : index
    %c0_4 = arith.constant 0 : index
    %4 = vector.load %arg5[%c0_3, %c0_4] : memref<2x4xf32, #tpu.memory_space<vmem>>, vector<2x4xf32>
    %cst = arith.constant dense<0xFF800000> : vector<2x4xf32>
    %5 = vector.multi_reduction <maximumf>, %3, %cst [1] : vector<2x256x4xf32> to vector<2x4xf32>
    %6 = arith.maximumf %4, %5 : vector<2x4xf32>
    %c0_5 = arith.constant 0 : index
    %c0_6 = arith.constant 0 : index
    %7 = vector.load %arg5[%c0_5, %c0_6] : memref<2x4xf32, #tpu.memory_space<vmem>>, vector<2x4xf32>
    tpu.vector_store %arg5[%c0_5, %c0_6], %6 {strides = array<i32>} : memref<2x4xf32, #tpu.memory_space<vmem>>, vector<2x4xf32>,
    %c0_7 = arith.constant 0 : index
    %c0_8 = arith.constant 0 : index
    %8 = vector.load %arg6[%c0_7, %c0_8] : memref<2x4xf32, #tpu.memory_space<vmem>>, vector<2x4xf32>
    %cst_9 = arith.constant dense<0.000000e+00> : vector<2x4xf32>
    %9 = vector.multi_reduction <add>, %3, %cst_9 [1] : vector<2x256x4xf32> to vector<2x4xf32>
    %10 = arith.addf %8, %9 : vector<2x4xf32>
    %c0_10 = arith.constant 0 : index
    %c0_11 = arith.constant 0 : index
    %11 = vector.load %arg6[%c0_10, %c0_11] : memref<2x4xf32, #tpu.memory_space<vmem>>, vector<2x4xf32>
    tpu.vector_store %arg6[%c0_10, %c0_11], %10 {strides = array<i32>} : memref<2x4xf32, #tpu.memory_space<vmem>>, vector<2x4xf32>,
    %c0_i32_12 = arith.constant 0 : i32
    %12 = arith.cmpi eq, %arg1, %c0_i32_12 : i32
    %13 = arith.extui %12 : i1 to i32
    %c0_i32_13 = arith.constant 0 : i32
    %14 = arith.cmpi ne, %13, %c0_i32_13 : i32
    scf.if %14 {
      %c0_14 = arith.constant 0 : index
      %c0_15 = arith.constant 0 : index
      %15 = vector.load %arg5[%c0_14, %c0_15] : memref<2x4xf32, #tpu.memory_space<vmem>>, vector<2x4xf32>
      %c0_16 = arith.constant 0 : index
      %c0_17 = arith.constant 0 : index
      %16 = vector.load %arg3[%c0_16, %c0_17] : memref<2x4xf32, #tpu.memory_space<vmem>>, vector<2x4xf32>
      tpu.vector_store %arg3[%c0_16, %c0_17], %15 {strides = array<i32>} : memref<2x4xf32, #tpu.memory_space<vmem>>, vector<2x4xf32>,
      %c0_18 = arith.constant 0 : index
      %c0_19 = arith.constant 0 : index
      %17 = vector.load %arg6[%c0_18, %c0_19] : memref<2x4xf32, #tpu.memory_space<vmem>>, vector<2x4xf32>
      %cst_20 = arith.constant 3.906250e-03 : f32
      %18 = vector.broadcast %cst_20 : f32 to vector<2x4xf32>
      %19 = arith.mulf %17, %18 : vector<2x4xf32>
      %c0_21 = arith.constant 0 : index
      %c0_22 = arith.constant 0 : index
      %20 = vector.load %arg4[%c0_21, %c0_22] : memref<2x4xf32, #tpu.memory_space<vmem>>, vector<2x4xf32>
      tpu.vector_store %arg4[%c0_21, %c0_22], %19 {strides = array<i32>} : memref<2x4xf32, #tpu.memory_space<vmem>>, vector<2x4xf32>,
    } else {
    }
    return
  }
  func.func @transform_0(%arg0: i32, %arg1: i32) -> (i32, i32, i32) {
    %c0_i32 = arith.constant 0 : i32
    %c0_i32_0 = arith.constant 0 : i32
    return %arg0, %arg1, %c0_i32 : i32, i32, i32
  }
  func.func @transform_1(%arg0: i32, %arg1: i32) -> (i32, i32) {
    %c0_i32 = arith.constant 0 : i32
    %c0_i32_0 = arith.constant 0 : i32
    return %arg0, %c0_i32 : i32, i32
  }
  func.func @transform_2(%arg0: i32, %arg1: i32) -> (i32, i32) {
    %c0_i32 = arith.constant 0 : i32
    %c0_i32_0 = arith.constant 0 : i32
    return %arg0, %c0_i32 : i32, i32
  }
}

</mosaic_0001>

<llo_original>
// kernel: tpu_custom_call.1
$region0: #{tpu_custom_call.1}
  #allocation0 [shape = 'u32[]', space=smem, size = 0x4, offset = 0x4, fixed_abs, tag = 'smem constant byte address 0x4 - core index']
  #allocation1 [shape = 'u32[72,128]{1,0:T(1,128)}', space=vmem, size = 0x9000, scoped, tag = 'internal scratch']
  #allocation2 [shape = 'f32[2,4]{1,0:T(2,128)}', space=vmem, size = 0x400, scoped, tag = 'scratch operand']
  #allocation3 [shape = 'f32[2,4]{1,0:T(2,128)}', space=vmem, size = 0x400, scoped, tag = 'scratch operand']
  %s0 = inlined_call_operand.vmem [shape: f32[2,256,4], index: 0, kind: input, shape index: {}]
  %s1 = inlined_call_operand.hbm [shape: f32[2,4], index: 1, kind: output, shape index: {0}]
  %s2 = inlined_call_operand.hbm [shape: f32[2,4], index: 2, kind: output, shape index: {1}]
  %3 = xla_tuple %s1, %s2
  %s4 = sld [smem:[#allocation0]]
  $region30: #{tpu_custom_call.1} parent=0
    _
  %s6 = ssub.s32 1, %s4
  %s7 = scalar_select 0, %s6, %s4
  $region1: #{tpu_custom_call.1} parent=0
    #allocation4 [shape = 'u8[1024]{0}', space=vmem, size = 0x400, scoped, tag = 'output window, operand 0, single buffered']
    #allocation5 [shape = 's32[1]{0}', space=sflag, size = 0x4, scoped, tag = 'scoped memory for tpu_custom_call.1']
    #allocation6 [shape = 'u8[1024]{0}', space=vmem, size = 0x400, scoped, tag = 'output window, operand 1, single buffered']
    #allocation7 [shape = 's32[1]{0}', space=sflag, size = 0x4, scoped, tag = 'scoped memory for tpu_custom_call.1']
    %8 = vsyncpa [#allocation5], 0
    %9 = vsyncpa [#allocation7], 0
    // Predicated region
    $region2: #{tpu_custom_call.1} parent=1 // pred_check
      _
    $region3: #{tpu_custom_call.1} parent=1 // pred_check_branch
      %11 = sbr.rel (0) target = $region5
    $region4: #{tpu_custom_call.1} parent=1 // pred_region
      _
    $region5: #{tpu_custom_call.1} parent=1 // pred_fallthru
      _
    %p12 = scmp.eq.s32.totalorder 0, 0
    // Predicated region
    $region6: #{tpu_custom_call.1} parent=1 // pred_check
      %p13 = pneg %p12
    $region7: #{tpu_custom_call.1} parent=1 // pred_check_branch
      %15 = sbr.rel (%p13) target = $region9
    $region8: #{tpu_custom_call.1} parent=1 // pred_region
      %vm16 = vcmask 25600
      %17 = vst.msk [vmem:[#allocation2] sm:$0x3] %vm16, -inf
      %18 = vst.msk [vmem:[#allocation3] sm:$0x3] %vm16, 0.0
    $region9: #{tpu_custom_call.1} parent=1 // pred_fallthru
      _
    %v19 = vld [vmem:[%s0] sm:$0xff]
    %v20 = vld [vmem:[%s0 + $0x8] sm:$0xff]
    %v21 = vld [vmem:[%s0 + $0x10] sm:$0xff]
    %v22 = vld [vmem:[%s0 + $0x18] sm:$0xff]
    %v23 = vld [vmem:[%s0 + $0x20] sm:$0xff]
    %v24 = vld [vmem:[%s0 + $0x28] sm:$0xff]
    %v25 = vld [vmem:[%s0 + $0x30] sm:$0xff]
    %v26 = vld [vmem:[%s0 + $0x38] sm:$0xff]
    %v27 = vld [vmem:[%s0 + $0x40] sm:$0xff]
    %v28 = vld [vmem:[%s0 + $0x48] sm:$0xff]
    %v29 = vld [vmem:[%s0 + $0x50] sm:$0xff]
    %v30 = vld [vmem:[%s0 + $0x58] sm:$0xff]
    %v31 = vld [vmem:[%s0 + $0x60] sm:$0xff]
    %v32 = vld [vmem:[%s0 + $0x68] sm:$0xff]
    %v33 = vld [vmem:[%s0 + $0x70] sm:$0xff]
    %v34 = vld [vmem:[%s0 + $0x78] sm:$0xff]
    %v35 = vld [vmem:[%s0 + $0x80] sm:$0xff]
    %v36 = vld [vmem:[%s0 + $0x88] sm:$0xff]
    %v37 = vld [vmem:[%s0 + $0x90] sm:$0xff]
    %v38 = vld [vmem:[%s0 + $0x98] sm:$0xff]
    %v39 = vld [vmem:[%s0 + $0xa0] sm:$0xff]
    %v40 = vld [vmem:[%s0 + $0xa8] sm:$0xff]
    %v41 = vld [vmem:[%s0 + $0xb0] sm:$0xff]
    %v42 = vld [vmem:[%s0 + $0xb8] sm:$0xff]
    %v43 = vld [vmem:[%s0 + $0xc0] sm:$0xff]
    %v44 = vld [vmem:[%s0 + $0xc8] sm:$0xff]
    %v45 = vld [vmem:[%s0 + $0xd0] sm:$0xff]
    %v46 = vld [vmem:[%s0 + $0xd8] sm:$0xff]
    %v47 = vld [vmem:[%s0 + $0xe0] sm:$0xff]
    %v48 = vld [vmem:[%s0 + $0xe8] sm:$0xff]
    %v49 = vld [vmem:[%s0 + $0xf0] sm:$0xff]
    %v50 = vld [vmem:[%s0 + $0xf8] sm:$0xff]
    %v51 = vld [vmem:[%s0 + $0x100] sm:$0xff]
    %v52 = vld [vmem:[%s0 + $0x108] sm:$0xff]
    %v53 = vld [vmem:[%s0 + $0x110] sm:$0xff]
    %v54 = vld [vmem:[%s0 + $0x118] sm:$0xff]
    %v55 = vld [vmem:[%s0 + $0x120] sm:$0xff]
    %v56 = vld [vmem:[%s0 + $0x128] sm:$0xff]
    %v57 = vld [vmem:[%s0 + $0x130] sm:$0xff]
    %v58 = vld [vmem:[%s0 + $0x138] sm:$0xff]
    %v59 = vld [vmem:[%s0 + $0x140] sm:$0xff]
    %v60 = vld [vmem:[%s0 + $0x148] sm:$0xff]
    %v61 = vld [vmem:[%s0 + $0x150] sm:$0xff]
    %v62 = vld [vmem:[%s0 + $0x158] sm:$0xff]
    %v63 = vld [vmem:[%s0 + $0x160] sm:$0xff]
    %v64 = vld [vmem:[%s0 + $0x168] sm:$0xff]
    %v65 = vld [vmem:[%s0 + $0x170] sm:$0xff]
    %v66 = vld [vmem:[%s0 + $0x178] sm:$0xff]
    %v67 = vld [vmem:[%s0 + $0x180] sm:$0xff]
    %v68 = vld [vmem:[%s0 + $0x188] sm:$0xff]
    %v69 = vld [vmem:[%s0 + $0x190] sm:$0xff]
    %v70 = vld [vmem:[%s0 + $0x198] sm:$0xff]
    %v71 = vld [vmem:[%s0 + $0x1a0] sm:$0xff]
    %v72 = vld [vmem:[%s0 + $0x1a8] sm:$0xff]
    %v73 = vld [vmem:[%s0 + $0x1b0] sm:$0xff]
    %v74 = vld [vmem:[%s0 + $0x1b8] sm:$0xff]
    %v75 = vld [vmem:[%s0 + $0x1c0] sm:$0xff]
    %v76 = vld [vmem:[%s0 + $0x1c8] sm:$0xff]
    %v77 = vld [vmem:[%s0 + $0x1d0] sm:$0xff]
    %v78 = vld [vmem:[%s0 + $0x1d8] sm:$0xff]
    %v79 = vld [vmem:[%s0 + $0x1e0] sm:$0xff]
    %v80 = vld [vmem:[%s0 + $0x1e8] sm:$0xff]
    %v81 = vld [vmem:[%s0 + $0x1f0] sm:$0xff]
    %v82 = vld [vmem:[%s0 + $0x1f8] sm:$0xff]
    %v83 = vld [vmem:[#allocation2] sm:$0x3]
    %vm84 = vcmask 31744
    %v85 = vsel %vm84, %v19, -inf
    %v86 = vsel %vm84, %v20, -inf
    %v87 = vsel %vm84, %v21, -inf
    %v88 = vmax.f32 %v85, %v87
    %v89 = vsel %vm84, %v22, -inf
    %v90 = vmax.f32 %v86, %v89
    %v91 = vsel %vm84, %v23, -inf
    %v92 = vmax.f32 %v88, %v91
    %v93 = vsel %vm84, %v24, -inf
    %v94 = vmax.f32 %v90, %v93
    %v95 = vsel %vm84, %v25, -inf
    %v96 = vmax.f32 %v92, %v95
    %v97 = vsel %vm84, %v26, -inf
    %v98 = vmax.f32 %v94, %v97
    %v99 = vsel %vm84, %v27, -inf
    %v100 = vmax.f32 %v96, %v99
    %v101 = vsel %vm84, %v28, -inf
    %v102 = vmax.f32 %v98, %v101
    %v103 = vsel %vm84, %v29, -inf
    %v104 = vmax.f32 %v100, %v103
    %v105 = vsel %vm84, %v30, -inf
    %v106 = vmax.f32 %v102, %v105
    %v107 = vsel %vm84, %v31, -inf
    %v108 = vmax.f32 %v104, %v107
    %v109 = vsel %vm84, %v32, -inf
    %v110 = vmax.f32 %v106, %v109
    %v111 = vsel %vm84, %v33, -inf
    %v112 = vmax.f32 %v108, %v111
    %v113 = vsel %vm84, %v34, -inf
    %v114 = vmax.f32 %v110, %v113
    %v115 = vsel %vm84, %v35, -inf
    %v116 = vmax.f32 %v112, %v115
    %v117 = vsel %vm84, %v36, -inf
    %v118 = vmax.f32 %v114, %v117
    %v119 = vsel %vm84, %v37, -inf
    %v120 = vmax.f32 %v116, %v119
    %v121 = vsel %vm84, %v38, -inf
    %v122 = vmax.f32 %v118, %v121
    %v123 = vsel %vm84, %v39, -inf
    %v124 = vmax.f32 %v120, %v123
    %v125 = vsel %vm84, %v40, -inf
    %v126 = vmax.f32 %v122, %v125
    %v127 = vsel %vm84, %v41, -inf
    %v128 = vmax.f32 %v124, %v127
    %v129 = vsel %vm84, %v42, -inf
    %v130 = vmax.f32 %v126, %v129
    %v131 = vsel %vm84, %v43, -inf
    %v132 = vmax.f32 %v128, %v131
    %v133 = vsel %vm84, %v44, -inf
    %v134 = vmax.f32 %v130, %v133
    %v135 = vsel %vm84, %v45, -inf
    %v136 = vmax.f32 %v132, %v135
    %v137 = vsel %vm84, %v46, -inf
    %v138 = vmax.f32 %v134, %v137
    %v139 = vsel %vm84, %v47, -inf
    %v140 = vmax.f32 %v136, %v139
    %v141 = vsel %vm84, %v48, -inf
    %v142 = vmax.f32 %v138, %v141
    %v143 = vsel %vm84, %v49, -inf
    %v144 = vmax.f32 %v140, %v143
    %v145 = vsel %vm84, %v50, -inf
    %v146 = vmax.f32 %v142, %v145
    %v147 = vmax.f32 %v144, %v146
    %v148 = vrot.slane %v147, 4
    %v149 = vmax.f32 %v147, %v148
    %v150 = vrot.slane %v149, 2
    %v151 = vmax.f32 %v149, %v150
    %v152 = vrot.slane %v151, 1
    %v153 = vmax.f32 %v151, %v152
    %v154 = vsel %vm84, %v51, -inf
    %v155 = vsel %vm84, %v52, -inf
    %v156 = vsel %vm84, %v53, -inf
    %v157 = vmax.f32 %v154, %v156
    %v158 = vsel %vm84, %v54, -inf
    %v159 = vmax.f32 %v155, %v158
    %v160 = vsel %vm84, %v55, -inf
    %v161 = vmax.f32 %v157, %v160
    %v162 = vsel %vm84, %v56, -inf
    %v163 = vmax.f32 %v159, %v162
    %v164 = vsel %vm84, %v57, -inf
    %v165 = vmax.f32 %v161, %v164
    %v166 = vsel %vm84, %v58, -inf
    %v167 = vmax.f32 %v163, %v166
    %v168 = vsel %vm84, %v59, -inf
    %v169 = vmax.f32 %v165, %v168
    %v170 = vsel %vm84, %v60, -inf
    %v171 = vmax.f32 %v167, %v170
    %v172 = vsel %vm84, %v61, -inf
    %v173 = vmax.f32 %v169, %v172
    %v174 = vsel %vm84, %v62, -inf
    %v175 = vmax.f32 %v171, %v174
    %v176 = vsel %vm84, %v63, -inf
    %v177 = vmax.f32 %v173, %v176
    %v178 = vsel %vm84, %v64, -inf
    %v179 = vmax.f32 %v175, %v178
    %v180 = vsel %vm84, %v65, -inf
    %v181 = vmax.f32 %v177, %v180
    %v182 = vsel %vm84, %v66, -inf
    %v183 = vmax.f32 %v179, %v182
    %v184 = vsel %vm84, %v67, -inf
    %v185 = vmax.f32 %v181, %v184
    %v186 = vsel %vm84, %v68, -inf
    %v187 = vmax.f32 %v183, %v186
    %v188 = vsel %vm84, %v69, -inf
    %v189 = vmax.f32 %v185, %v188
    %v190 = vsel %vm84, %v70, -inf
    %v191 = vmax.f32 %v187, %v190
    %v192 = vsel %vm84, %v71, -inf
    %v193 = vmax.f32 %v189, %v192
    %v194 = vsel %vm84, %v72, -inf
    %v195 = vmax.f32 %v191, %v194
    %v196 = vsel %vm84, %v73, -inf
    %v197 = vmax.f32 %v193, %v196
    %v198 = vsel %vm84, %v74, -inf
    %v199 = vmax.f32 %v195, %v198
    %v200 = vsel %vm84, %v75, -inf
    %v201 = vmax.f32 %v197, %v200
    %v202 = vsel %vm84, %v76, -inf
    %v203 = vmax.f32 %v199, %v202
    %v204 = vsel %vm84, %v77, -inf
    %v205 = vmax.f32 %v201, %v204
    %v206 = vsel %vm84, %v78, -inf
    %v207 = vmax.f32 %v203, %v206
    %v208 = vsel %vm84, %v79, -inf
    %v209 = vmax.f32 %v205, %v208
    %v210 = vsel %vm84, %v80, -inf
    %v211 = vmax.f32 %v207, %v210
    %v212 = vsel %vm84, %v81, -inf
    %v213 = vmax.f32 %v209, %v212
    %v214 = vsel %vm84, %v82, -inf
    %v215 = vmax.f32 %v211, %v214
    %v216 = vmax.f32 %v213, %v215
    %v217 = vrot.slane %v216, 4
    %v218 = vmax.f32 %v216, %v217
    %v219 = vrot.slane %v218, 2
    %v220 = vmax.f32 %v218, %v219
    %v221 = vrot.slane %v220, 1
    %v222 = vmax.f32 %v220, %v221
    %vm225 = vcmask 1041409
    %v226 = vsel %vm225, %v222, %v153
    %v228 = vmax.f32 %v83, %v226
    %vm229 = vcmask 25600
    %230 = vst.msk [vmem:[#allocation2] sm:$0x3] %vm229, %v228
    %v231 = vld [vmem:[#allocation3] sm:$0x3]
    %v232 = vsel %vm84, %v19, 0.0
    %v233 = vsel %vm84, %v20, 0.0
    %v234 = vadd.f32 %v232, %v233
    %v235 = vsel %vm84, %v21, 0.0
    %v236 = vadd.f32 %v234, %v235
    %v237 = vsel %vm84, %v22, 0.0
    %v238 = vadd.f32 %v236, %v237
    %v239 = vsel %vm84, %v23, 0.0
    %v240 = vadd.f32 %v238, %v239
    %v241 = vsel %vm84, %v24, 0.0
    %v242 = vadd.f32 %v240, %v241
    %v243 = vsel %vm84, %v25, 0.0
    %v244 = vadd.f32 %v242, %v243
    %v245 = vsel %vm84, %v26, 0.0
    %v246 = vadd.f32 %v244, %v245
    %v247 = vsel %vm84, %v27, 0.0
    %v248 = vadd.f32 %v246, %v247
    %v249 = vsel %vm84, %v28, 0.0
    %v250 = vadd.f32 %v248, %v249
    %v251 = vsel %vm84, %v29, 0.0
    %v252 = vadd.f32 %v250, %v251
    %v253 = vsel %vm84, %v30, 0.0
    %v254 = vadd.f32 %v252, %v253
    %v255 = vsel %vm84, %v31, 0.0
    %v256 = vadd.f32 %v254, %v255
    %v257 = vsel %vm84, %v32, 0.0
    %v258 = vadd.f32 %v256, %v257
    %v259 = vsel %vm84, %v33, 0.0
    %v260 = vadd.f32 %v258, %v259
    %v261 = vsel %vm84, %v34, 0.0
    %v262 = vadd.f32 %v260, %v261
    %v263 = vsel %vm84, %v35, 0.0
    %v264 = vadd.f32 %v262, %v263
    %v265 = vsel %vm84, %v36, 0.0
    %v266 = vadd.f32 %v264, %v265
    %v267 = vsel %vm84, %v37, 0.0
    %v268 = vadd.f32 %v266, %v267
    %v269 = vsel %vm84, %v38, 0.0
    %v270 = vadd.f32 %v268, %v269
    %v271 = vsel %vm84, %v39, 0.0
    %v272 = vadd.f32 %v270, %v271
    %v273 = vsel %vm84, %v40, 0.0
    %v274 = vadd.f32 %v272, %v273
    %v275 = vsel %vm84, %v41, 0.0
    %v276 = vadd.f32 %v274, %v275
    %v277 = vsel %vm84, %v42, 0.0
    %v278 = vadd.f32 %v276, %v277
    %v279 = vsel %vm84, %v43, 0.0
    %v280 = vadd.f32 %v278, %v279
    %v281 = vsel %vm84, %v44, 0.0
    %v282 = vadd.f32 %v280, %v281
    %v283 = vsel %vm84, %v45, 0.0
    %v284 = vadd.f32 %v282, %v283
    %v285 = vsel %vm84, %v46, 0.0
    %v286 = vadd.f32 %v284, %v285
    %v287 = vsel %vm84, %v47, 0.0
    %v288 = vadd.f32 %v286, %v287
    %v289 = vsel %vm84, %v48, 0.0
    %v290 = vadd.f32 %v288, %v289
    %v291 = vsel %vm84, %v49, 0.0
    %v292 = vadd.f32 %v290, %v291
    %v293 = vsel %vm84, %v50, 0.0
    %v294 = vadd.f32 %v292, %v293
    %v295 = vrot.slane %v294, 4
    %v296 = vadd.f32 %v294, %v295
    %v297 = vrot.slane %v296, 2
    %v298 = vadd.f32 %v296, %v297
    %v299 = vrot.slane %v298, 1
    %v300 = vadd.f32 %v298, %v299
    %v301 = vsel %vm84, %v51, 0.0
    %v302 = vsel %vm84, %v52, 0.0
    %v303 = vadd.f32 %v301, %v302
    %v304 = vsel %vm84, %v53, 0.0
    %v305 = vadd.f32 %v303, %v304
    %v306 = vsel %vm84, %v54, 0.0
    %v307 = vadd.f32 %v305, %v306
    %v308 = vsel %vm84, %v55, 0.0
    %v309 = vadd.f32 %v307, %v308
    %v310 = vsel %vm84, %v56, 0.0
    %v311 = vadd.f32 %v309, %v310
    %v312 = vsel %vm84, %v57, 0.0
    %v313 = vadd.f32 %v311, %v312
    %v314 = vsel %vm84, %v58, 0.0
    %v315 = vadd.f32 %v313, %v314
    %v316 = vsel %vm84, %v59, 0.0
    %v317 = vadd.f32 %v315, %v316
    %v318 = vsel %vm84, %v60, 0.0
    %v319 = vadd.f32 %v317, %v318
    %v320 = vsel %vm84, %v61, 0.0
    %v321 = vadd.f32 %v319, %v320
    %v322 = vsel %vm84, %v62, 0.0
    %v323 = vadd.f32 %v321, %v322
    %v324 = vsel %vm84, %v63, 0.0
    %v325 = vadd.f32 %v323, %v324
    %v326 = vsel %vm84, %v64, 0.0
    %v327 = vadd.f32 %v325, %v326
    %v328 = vsel %vm84, %v65, 0.0
    %v329 = vadd.f32 %v327, %v328
    %v330 = vsel %vm84, %v66, 0.0
    %v331 = vadd.f32 %v329, %v330
    %v332 = vsel %vm84, %v67, 0.0
    %v333 = vadd.f32 %v331, %v332
    %v334 = vsel %vm84, %v68, 0.0
    %v335 = vadd.f32 %v333, %v334
    %v336 = vsel %vm84, %v69, 0.0
    %v337 = vadd.f32 %v335, %v336
    %v338 = vsel %vm84, %v70, 0.0
    %v339 = vadd.f32 %v337, %v338
    %v340 = vsel %vm84, %v71, 0.0
    %v341 = vadd.f32 %v339, %v340
    %v342 = vsel %vm84, %v72, 0.0
    %v343 = vadd.f32 %v341, %v342
    %v344 = vsel %vm84, %v73, 0.0
    %v345 = vadd.f32 %v343, %v344
    %v346 = vsel %vm84, %v74, 0.0
    %v347 = vadd.f32 %v345, %v346
    %v348 = vsel %vm84, %v75, 0.0
    %v349 = vadd.f32 %v347, %v348
    %v350 = vsel %vm84, %v76, 0.0
    %v351 = vadd.f32 %v349, %v350
    %v352 = vsel %vm84, %v77, 0.0
    %v353 = vadd.f32 %v351, %v352
    %v354 = vsel %vm84, %v78, 0.0
    %v355 = vadd.f32 %v353, %v354
    %v356 = vsel %vm84, %v79, 0.0
    %v357 = vadd.f32 %v355, %v356
    %v358 = vsel %vm84, %v80, 0.0
    %v359 = vadd.f32 %v357, %v358
    %v360 = vsel %vm84, %v81, 0.0
    %v361 = vadd.f32 %v359, %v360
    %v362 = vsel %vm84, %v82, 0.0
    %v363 = vadd.f32 %v361, %v362
    %v364 = vrot.slane %v363, 4
    %v365 = vadd.f32 %v363, %v364
    %v366 = vrot.slane %v365, 2
    %v367 = vadd.f32 %v365, %v366
    %v368 = vrot.slane %v367, 1
    %v369 = vadd.f32 %v367, %v368
    %v372 = vsel %vm225, %v369, %v300
    %v374 = vadd.f32 %v231, %v372
    %375 = vst.msk [vmem:[#allocation3] sm:$0x3] %vm229, %v374
    // Predicated region
    $region10: #{tpu_custom_call.1} parent=1 // pred_check
      %p376 = pneg %p12
    $region11: #{tpu_custom_call.1} parent=1 // pred_check_branch
      %378 = sbr.rel (%p376) target = $region13
    $region12: #{tpu_custom_call.1} parent=1 // pred_region
      %v379 = vld [vmem:[#allocation2] sm:$0x3]
      %380 = vst.msk [vmem:[#allocation4] sm:$0x3] %vm229, %v379
      %v381 = vld [vmem:[#allocation3] sm:$0x3]
      %v382 = vmul.f32 %v381, 0.00390625
      %383 = vst.msk [vmem:[#allocation6] sm:$0x3] %vm229, %v382
    $region13: #{tpu_custom_call.1} parent=1 // pred_fallthru
      _
    // Predicated region
    $region14: #{tpu_custom_call.1} parent=1 // pred_check
      _
    $region15: #{tpu_custom_call.1} parent=1 // pred_check_branch
      %385 = sbr.rel (0) target = $region17
    $region16: #{tpu_custom_call.1} parent=1 // pred_region
      %387 = vsyncadd [#allocation5], 0
      %s389 = sshll.u32 [#allocation4], 4
      %s390 = int_to_ptr.vmem [resolvable:$true] %s389
      %s391 = sshll.u32 %s1, 4
      %s392 = int_to_ptr.hbm [resolvable:$true] %s391
      %394 = dma.vmem_to_hbm [thread:$0]  %s390, 32, %s392, [#allocation5]
    $region17: #{tpu_custom_call.1} parent=1 // pred_fallthru
      _
    // Predicated region
    $region18: #{tpu_custom_call.1} parent=1 // pred_check
      _
    $region19: #{tpu_custom_call.1} parent=1 // pred_check_branch
      %396 = sbr.rel (0) target = $region21
    $region20: #{tpu_custom_call.1} parent=1 // pred_region
      %398 = vsyncadd [#allocation7], 0
      %s400 = sshll.u32 [#allocation6], 4
      %s401 = int_to_ptr.vmem [resolvable:$true] %s400
      %s402 = sshll.u32 %s2, 4
      %s403 = int_to_ptr.hbm [resolvable:$true] %s402
      %405 = dma.vmem_to_hbm [thread:$0]  %s401, 32, %s403, [#allocation7]
    $region21: #{tpu_custom_call.1} parent=1 // pred_fallthru
      _
    // Predicated region
    $region22: #{tpu_custom_call.1} parent=1 // pred_check
      _
    $region23: #{tpu_custom_call.1} parent=1 // pred_check_branch
      %407 = sbr.rel (0) target = $region25
    $region24: #{tpu_custom_call.1} parent=1 // pred_region
      %409 = dma.done [#allocation5], 32
    $region25: #{tpu_custom_call.1} parent=1 // pred_fallthru
      _
    // Predicated region
    $region26: #{tpu_custom_call.1} parent=1 // pred_check
      _
    $region27: #{tpu_custom_call.1} parent=1 // pred_check_branch
      %411 = sbr.rel (0) target = $region29
    $region28: #{tpu_custom_call.1} parent=1 // pred_region
      %413 = dma.done [#allocation7], 32
    $region29: #{tpu_custom_call.1} parent=1 // pred_fallthru
      _
    %414 = vsyncpa [#allocation5], 1
    %415 = vsyncpa [#allocation7], 1

</llo_original>
